<compile_context>
chip_gen: v7x
topology: tpu7x:2x2x1
jax: 0.10.0
libtpu: 0.0.40
codegen_flags: <defaults>
</compile_context>

<pallas_src>
import jax
import jax.numpy as jnp
from jax import lax
from jax.experimental import pallas as pl
from jax.experimental.pallas import tpu as pltpu

SMOOTH = 1.0  # DiceLoss.smooth


def _make_combined_loss_kernel(B, C, P, smooth):
    BP = B * P
    inv_pixels = 1.0 / float(BP)          # CrossEntropyLoss 'mean' over all pixels
    inv_bc = 1.0 / float(B * C)           # dice.mean()

    def kernel(logits_ref, tgt_ref, loss_ref):
        # logits_ref: (C, B*P) f32 VMEM   (pixels of batch b at lanes [b*P, (b+1)*P))
        # tgt_ref:    (1, B*P) i32 VMEM
        # loss_ref:   (1,)     f32 SMEM
        logits = logits_ref[...]                                   # (C, BP)
        tgt = tgt_ref[...]                                         # (1, BP)

        # target mask over the class (sublane) axis: iota-compare, never cast to
        # a dense f32 one-hot.
        cls_iota = lax.broadcasted_iota(jnp.int32, (C, BP), 0)     # (C, BP)
        mask = cls_iota == tgt                                     # (C, BP) bool

        # numerically-stable softmax over the class axis (shared by CE and Dice)
        m = jnp.max(logits, axis=0, keepdims=True)                 # (1, BP)
        e = jnp.exp(logits - m)                                    # (C, BP)
        s = jnp.sum(e, axis=0, keepdims=True)                      # (1, BP)
        probs = e * pl.reciprocal(s)                               # exact; EUP is idle

        # ---- cross entropy (mean over all B*H*W pixels, weight=None) ----
        picked = jnp.sum(jnp.where(mask, logits, 0.0), axis=0, keepdims=True)  # (1, BP)
        lse = m + jnp.log(s)                                       # (1, BP)
        ce = jnp.sum(lse - picked) * inv_pixels

        # ---- dice loss ----
        p_sel = jnp.where(mask, probs, 0.0)                        # p * one_hot
        t_cnt = mask.astype(jnp.float32)                           # one_hot (for sums only)
        dice_sum = jnp.float32(0.0)
        for b in range(B):                                         # static lane slices
            lo, hi = b * P, (b + 1) * P
            inter = jnp.sum(p_sel[:, lo:hi], axis=1, keepdims=True)        # (C, 1)
            union = (jnp.sum(probs[:, lo:hi], axis=1, keepdims=True)
                     + jnp.sum(t_cnt[:, lo:hi], axis=1, keepdims=True))    # (C, 1)
            dice = (2.0 * inter + smooth) / (union + smooth)               # (C, 1)
            dice_sum = dice_sum + jnp.sum(dice)
        dice_loss = 1.0 - dice_sum * inv_bc

        loss_ref[0] = ce + dice_loss

    return kernel


def combined_loss(logits, targets, smooth=SMOOTH):
    """logits: (B, C, H, W) float, targets: (B, H, W) int -> scalar loss."""
    B, C, H, W = logits.shape
    P = H * W

    # Wrapper-side layout plumbing (XLA): lane-dense (C, B*P) slab, f32 math.
    logits2d = (jnp.transpose(logits.reshape(B, C, P), (1, 0, 2))
                .reshape(C, B * P).astype(jnp.float32))
    tgt2d = targets.reshape(1, B * P).astype(jnp.int32)

    loss1d = pl.pallas_call(
        _make_combined_loss_kernel(B, C, P, float(smooth)),
        out_shape=jax.ShapeDtypeStruct((1,), jnp.float32),
        in_specs=[
            pl.BlockSpec(memory_space=pltpu.MemorySpace.VMEM),     # logits (full block)
            pl.BlockSpec(memory_space=pltpu.MemorySpace.VMEM),     # targets (full block)
        ],
        out_specs=pl.BlockSpec(memory_space=pltpu.MemorySpace.SMEM),
    )(logits2d, tgt2d)
    return loss1d[0]


def combined_loss_reference(logits, targets, smooth=SMOOTH):
    """Pure-JAX reference of the PyTorch CombinedLoss.forward (weight=None)."""
    B, C, H, W = logits.shape
    logp = jax.nn.log_softmax(logits, axis=1)                      # (B, C, H, W)
    onehot = jax.nn.one_hot(targets, C, axis=1, dtype=jnp.float32) # (B, C, H, W)
    ce = -jnp.sum(onehot * logp) / (B * H * W)

    probs = jax.nn.softmax(logits, axis=1)
    pf = probs.reshape(B, C, -1)
    tf = onehot.reshape(B, C, -1)
    inter = jnp.sum(pf * tf, axis=2)
    union = jnp.sum(pf, axis=2) + jnp.sum(tf, axis=2)
    dice = (2.0 * inter + smooth) / (union + smooth)
    return ce + (1.0 - jnp.mean(dice))


if __name__ == "__main__":
    B, C, H, W = 2, 4, 16, 16
    key = jax.random.PRNGKey(0)
    k_logits, k_tgt = jax.random.split(key)
    logits = jax.random.normal(k_logits, (B, C, H, W), jnp.float32)
    targets = jax.random.randint(k_tgt, (B, H, W), 0, C, dtype=jnp.int32)

    loss = combined_loss(logits, targets)
    loss = jax.block_until_ready(loss)

    ref = combined_loss_reference(logits, targets)
    assert loss.shape == ()
    assert jnp.allclose(loss, ref, atol=1e-4, rtol=1e-4), (loss, ref)

    print("KERNEL_OK")
</pallas_src>

<mosaic_0001>
module attributes {stable_mosaic.version = 11 : i64} {
  func.func @kernel(%arg0: memref<4x512xf32, #tpu.memory_space<vmem>>, %arg1: memref<1x512xi32, #tpu.memory_space<vmem>>, %arg2: memref<1xf32, #tpu.memory_space<smem>>) attributes {dimension_semantics = [], scalar_prefetch = 0 : i64, scratch_operands = 0 : i64, tpu.core_type = #tpu.core_type<tc>} {
    %c0 = arith.constant 0 : index
    %c0_0 = arith.constant 0 : index
    %0 = vector.load %arg0[%c0, %c0_0] : memref<4x512xf32, #tpu.memory_space<vmem>>, vector<4x512xf32>
    %c0_1 = arith.constant 0 : index
    %c0_2 = arith.constant 0 : index
    %1 = vector.load %arg1[%c0_1, %c0_2] : memref<1x512xi32, #tpu.memory_space<vmem>>, vector<1x512xi32>
    %2 = tpu.iota {dimensions = array<i32: 0>} : vector<4x512xi32>
    %3 = vector.broadcast %1 : vector<1x512xi32> to vector<4x512xi32>
    %4 = arith.cmpi eq, %2, %3 : vector<4x512xi32>
    %cst = arith.constant dense<0xFF800000> : vector<512xf32>
    %5 = vector.multi_reduction <maximumf>, %0, %cst [0] : vector<4x512xf32> to vector<512xf32>
    %6 = vector.shape_cast %5 : vector<512xf32> to vector<1x512xf32>
    %7 = vector.broadcast %6 : vector<1x512xf32> to vector<4x512xf32>
    %8 = arith.subf %0, %7 : vector<4x512xf32>
    %9 = math.exp %8 : vector<4x512xf32>
    %cst_3 = arith.constant dense<0.000000e+00> : vector<512xf32>
    %10 = vector.multi_reduction <add>, %9, %cst_3 [0] : vector<4x512xf32> to vector<512xf32>
    %11 = vector.shape_cast %10 : vector<512xf32> to vector<1x512xf32>
    %12 = tpu.reciprocal %11 : vector<1x512xf32> -> vector<1x512xf32>
    %13 = vector.broadcast %12 : vector<1x512xf32> to vector<4x512xf32>
    %14 = arith.mulf %9, %13 : vector<4x512xf32>
    %cst_4 = arith.constant 0.000000e+00 : f32
    %15 = vector.broadcast %cst_4 : f32 to vector<4x512xf32>
    %16 = arith.select %4, %0, %15 : vector<4x512xi1>, vector<4x512xf32>
    %cst_5 = arith.constant dense<0.000000e+00> : vector<512xf32>
    %17 = vector.multi_reduction <add>, %16, %cst_5 [0] : vector<4x512xf32> to vector<512xf32>
    %18 = vector.shape_cast %17 : vector<512xf32> to vector<1x512xf32>
    %19 = math.log %11 : vector<1x512xf32>
    %20 = arith.addf %6, %19 : vector<1x512xf32>
    %21 = arith.subf %20, %18 : vector<1x512xf32>
    %22 = vector.shape_cast %21 : vector<1x512xf32> to vector<1x1x512xf32>
    %cst_6 = arith.constant dense<0.000000e+00> : vector<1xf32>
    %23 = vector.multi_reduction <add>, %22, %cst_6 [1, 2] : vector<1x1x512xf32> to vector<1xf32>
    %24 = vector.shape_cast %23 : vector<1xf32> to vector<1x1x1xf32>
    %25 = vector.extract %24[0, 0, 0] : f32 from vector<1x1x1xf32>
    %cst_7 = arith.constant 0.001953125 : f32
    %26 = arith.mulf %25, %cst_7 : f32
    %cst_8 = arith.constant 0.000000e+00 : f32
    %27 = vector.broadcast %cst_8 : f32 to vector<4x512xf32>
    %28 = arith.select %4, %14, %27 : vector<4x512xi1>, vector<4x512xf32>
    %29 = arith.extui %4 : vector<4x512xi1> to vector<4x512xi32>
    %30 = arith.sitofp %29 : vector<4x512xi32> to vector<4x512xf32>
    %31 = vector.extract_strided_slice %28 {offsets = [0, 0], sizes = [4, 256], strides = [1, 1]} : vector<4x512xf32> to vector<4x256xf32>
    %cst_9 = arith.constant dense<0.000000e+00> : vector<4xf32>
    %32 = vector.multi_reduction <add>, %31, %cst_9 [1] : vector<4x256xf32> to vector<4xf32>
    %33 = vector.shape_cast %32 : vector<4xf32> to vector<4x1xf32>
    %34 = vector.extract_strided_slice %14 {offsets = [0, 0], sizes = [4, 256], strides = [1, 1]} : vector<4x512xf32> to vector<4x256xf32>
    %cst_10 = arith.constant dense<0.000000e+00> : vector<4xf32>
    %35 = vector.multi_reduction <add>, %34, %cst_10 [1] : vector<4x256xf32> to vector<4xf32>
    %36 = vector.shape_cast %35 : vector<4xf32> to vector<4x1xf32>
    %37 = vector.extract_strided_slice %30 {offsets = [0, 0], sizes = [4, 256], strides = [1, 1]} : vector<4x512xf32> to vector<4x256xf32>
    %cst_11 = arith.constant dense<0.000000e+00> : vector<4xf32>
    %38 = vector.multi_reduction <add>, %37, %cst_11 [1] : vector<4x256xf32> to vector<4xf32>
    %39 = vector.shape_cast %38 : vector<4xf32> to vector<4x1xf32>
    %40 = arith.addf %36, %39 : vector<4x1xf32>
    %cst_12 = arith.constant 2.000000e+00 : f32
    %41 = vector.broadcast %cst_12 : f32 to vector<4x1xf32>
    %42 = arith.mulf %41, %33 : vector<4x1xf32>
    %cst_13 = arith.constant 1.000000e+00 : f32
    %43 = vector.broadcast %cst_13 : f32 to vector<4x1xf32>
    %44 = arith.addf %42, %43 : vector<4x1xf32>
    %cst_14 = arith.constant 1.000000e+00 : f32
    %45 = vector.broadcast %cst_14 : f32 to vector<4x1xf32>
    %46 = arith.addf %40, %45 : vector<4x1xf32>
    %47 = arith.divf %44, %46 : vector<4x1xf32>
    %48 = vector.shape_cast %47 : vector<4x1xf32> to vector<1x4x1xf32>
    %cst_15 = arith.constant dense<0.000000e+00> : vector<1xf32>
    %49 = vector.multi_reduction <add>, %48, %cst_15 [1, 2] : vector<1x4x1xf32> to vector<1xf32>
    %50 = vector.shape_cast %49 : vector<1xf32> to vector<1x1x1xf32>
    %51 = vector.extract %50[0, 0, 0] : f32 from vector<1x1x1xf32>
    %cst_16 = arith.constant 0.000000e+00 : f32
    %52 = arith.addf %cst_16, %51 : f32
    %53 = vector.extract_strided_slice %28 {offsets = [0, 256], sizes = [4, 256], strides = [1, 1]} : vector<4x512xf32> to vector<4x256xf32>
    %cst_17 = arith.constant dense<0.000000e+00> : vector<4xf32>
    %54 = vector.multi_reduction <add>, %53, %cst_17 [1] : vector<4x256xf32> to vector<4xf32>
    %55 = vector.shape_cast %54 : vector<4xf32> to vector<4x1xf32>
    %56 = vector.extract_strided_slice %14 {offsets = [0, 256], sizes = [4, 256], strides = [1, 1]} : vector<4x512xf32> to vector<4x256xf32>
    %cst_18 = arith.constant dense<0.000000e+00> : vector<4xf32>
    %57 = vector.multi_reduction <add>, %56, %cst_18 [1] : vector<4x256xf32> to vector<4xf32>
    %58 = vector.shape_cast %57 : vector<4xf32> to vector<4x1xf32>
    %59 = vector.extract_strided_slice %30 {offsets = [0, 256], sizes = [4, 256], strides = [1, 1]} : vector<4x512xf32> to vector<4x256xf32>
    %cst_19 = arith.constant dense<0.000000e+00> : vector<4xf32>
    %60 = vector.multi_reduction <add>, %59, %cst_19 [1] : vector<4x256xf32> to vector<4xf32>
    %61 = vector.shape_cast %60 : vector<4xf32> to vector<4x1xf32>
    %62 = arith.addf %58, %61 : vector<4x1xf32>
    %cst_20 = arith.constant 2.000000e+00 : f32
    %63 = vector.broadcast %cst_20 : f32 to vector<4x1xf32>
    %64 = arith.mulf %63, %55 : vector<4x1xf32>
    %cst_21 = arith.constant 1.000000e+00 : f32
    %65 = vector.broadcast %cst_21 : f32 to vector<4x1xf32>
    %66 = arith.addf %64, %65 : vector<4x1xf32>
    %cst_22 = arith.constant 1.000000e+00 : f32
    %67 = vector.broadcast %cst_22 : f32 to vector<4x1xf32>
    %68 = arith.addf %62, %67 : vector<4x1xf32>
    %69 = arith.divf %66, %68 : vector<4x1xf32>
    %70 = vector.shape_cast %69 : vector<4x1xf32> to vector<1x4x1xf32>
    %cst_23 = arith.constant dense<0.000000e+00> : vector<1xf32>
    %71 = vector.multi_reduction <add>, %70, %cst_23 [1, 2] : vector<1x4x1xf32> to vector<1xf32>
    %72 = vector.shape_cast %71 : vector<1xf32> to vector<1x1x1xf32>
    %73 = vector.extract %72[0, 0, 0] : f32 from vector<1x1x1xf32>
    %74 = arith.addf %52, %73 : f32
    %cst_24 = arith.constant 1.250000e-01 : f32
    %75 = arith.mulf %74, %cst_24 : f32
    %cst_25 = arith.constant 1.000000e+00 : f32
    %76 = arith.subf %cst_25, %75 : f32
    %77 = arith.addf %26, %76 : f32
    %c0_26 = arith.constant 0 : index
    %78 = memref.load %arg2[%c0_26] : memref<1xf32, #tpu.memory_space<smem>>
    memref.store %77, %arg2[%c0_26] : memref<1xf32, #tpu.memory_space<smem>>
    return
  }
}

</mosaic_0001>

<llo_original>
// kernel: tpu_custom_call.1
$region0: #{tpu_custom_call.1}
  #allocation0 [shape = 'u32[]', space=smem, size = 0x4, offset = 0x4, fixed_abs, tag = 'smem constant byte address 0x4 - core index']
  #allocation1 [shape = 'u32[144,128]{1,0:T(1,128)}', space=vmem, size = 0x12000, scoped, tag = 'internal scratch']
  %s0 = inlined_call_operand.hbm [shape: f32[4,512], index: 0, kind: input, shape index: {}]
  %s1 = inlined_call_operand.hbm [shape: s32[1,512], index: 1, kind: input, shape index: {}]
  %s2 = inlined_call_operand.hbm [shape: f32[1], index: 2, kind: output, shape index: {}]
  %s3 = sld [smem:[#allocation0]]
  $region26: #{tpu_custom_call.1} parent=0
    _
  %s5 = ssub.s32 1, %s3
  %s6 = scalar_select 0, %s5, %s3
  $region1: #{tpu_custom_call.1} parent=0
    #allocation2 [shape = 'u8[8192]{0}', space=vmem, size = 0x2000, scoped, tag = 'input window, operand 0, single buffered']
    #allocation3 [shape = 's32[1]{0}', space=sflag, size = 0x4, scoped, tag = 'scoped memory for tpu_custom_call.1']
    #allocation4 [shape = 's32[1]{0}', space=sflag, size = 0x4, scoped, tag = 'scoped memory for tpu_custom_call.1']
    #allocation5 [shape = 'u8[2048]{0}', space=vmem, size = 0x800, scoped, tag = 'input window, operand 1, single buffered']
    #allocation6 [shape = 's32[1]{0}', space=sflag, size = 0x4, scoped, tag = 'scoped memory for tpu_custom_call.1']
    #allocation7 [shape = 'u8[512]{0}', space=smem, size = 0x200, scoped, tag = 'output window, operand 0, single buffered']
    %7 = vsyncpa [#allocation3], 0
    %8 = vsyncpa [#allocation6], 0
    %9 = vsyncpa [#allocation4], 0
    // Predicated region
    $region2: #{tpu_custom_call.1} parent=1 // pred_check
      _
    $region3: #{tpu_custom_call.1} parent=1 // pred_check_branch
      %11 = sbr.rel (0) target = $region5
    $region4: #{tpu_custom_call.1} parent=1 // pred_region
      %s13 = ssub.s32 256, 256
      %14 = vsyncadd [#allocation3], %s13
      %s16 = sshll.u32 [#allocation2], 4
      %s17 = int_to_ptr.vmem [resolvable:$true] %s16
      %19 = dma.hbm_to_vmem [thread:$0]  %s0, 256, %s17, [#allocation3]
    $region5: #{tpu_custom_call.1} parent=1 // pred_fallthru
      _
    // Predicated region
    $region6: #{tpu_custom_call.1} parent=1 // pred_check
      _
    $region7: #{tpu_custom_call.1} parent=1 // pred_check_branch
      %21 = sbr.rel (0) target = $region9
    $region8: #{tpu_custom_call.1} parent=1 // pred_region
      %s23 = ssub.s32 64, 64
      %24 = vsyncadd [#allocation6], %s23
      %s26 = sshll.u32 [#allocation5], 4
      %s27 = int_to_ptr.vmem [resolvable:$true] %s26
      %29 = dma.hbm_to_vmem [thread:$0]  %s1, 64, %s27, [#allocation6]
    $region9: #{tpu_custom_call.1} parent=1 // pred_fallthru
      _
    // Predicated region
    $region10: #{tpu_custom_call.1} parent=1 // pred_check
      _
    $region11: #{tpu_custom_call.1} parent=1 // pred_check_branch
      %31 = sbr.rel (0) target = $region13
    $region12: #{tpu_custom_call.1} parent=1 // pred_region
      %32 = dma.done [#allocation3], 256
    $region13: #{tpu_custom_call.1} parent=1 // pred_fallthru
      _
    // Predicated region
    $region14: #{tpu_custom_call.1} parent=1 // pred_check
      _
    $region15: #{tpu_custom_call.1} parent=1 // pred_check_branch
      %34 = sbr.rel (0) target = $region17
    $region16: #{tpu_custom_call.1} parent=1 // pred_region
      %35 = dma.done [#allocation6], 64
    $region17: #{tpu_custom_call.1} parent=1 // pred_fallthru
      _
    %v36 = vld [vmem:[#allocation2] sm:$0xff]
    %v37 = vld [vmem:[#allocation2 + $0x8] sm:$0xff]
    %v38 = vld [vmem:[#allocation5] sm:$0xf]
    %v39 = vlaneseq
    %v40 = vshrl.u32 %v39, 7
    %v41 = vlaneseq
    %v42 = vshrl.u32 %v41, 7
    %v43 = vsub.s32 0, %v42
    %v44 = vrot.slane %v38, %v43
    %v45 = vlaneseq
    %v46 = vshrl.u32 %v45, 7
    %v47 = vsub.s32 1, %v46
    %v48 = vrot.slane %v38, %v47
    %v49 = vlaneseq
    %v50 = vshrl.u32 %v49, 7
    %v51 = vsub.s32 2, %v50
    %v52 = vrot.slane %v38, %v51
    %v53 = vlaneseq
    %v54 = vshrl.u32 %v53, 7
    %v55 = vsub.s32 3, %v54
    %v56 = vrot.slane %v38, %v55
    %vm57 = vcmp.eq.s32.totalorder %v40, %v44
    %vm58 = vcmp.eq.s32.totalorder %v40, %v48
    %vm59 = vcmp.eq.s32.totalorder %v40, %v52
    %vm60 = vcmp.eq.s32.totalorder %v40, %v56
    %v63 = vcombine.high %v36, %v36
    %v64 = vcombine.high %v37, %v37
    %vm67 = vcmask 1043456
    %v68 = vsel %vm67, %v36, -inf
    %v69 = vrot.slane %v68, 4
    %v70 = vmax.f32 %v68, %v69
    %v71 = vrot.slane %v70, 2
    %v72 = vmax.f32 %v70, %v71
    %v73 = vrot.slane %v72, 1
    %v74 = vmax.f32 %v72, %v73
    %v75 = vsel %vm67, %v63, -inf
    %v76 = vrot.slane %v75, 4
    %v77 = vmax.f32 %v75, %v76
    %v78 = vrot.slane %v77, 2
    %v79 = vmax.f32 %v77, %v78
    %v80 = vrot.slane %v79, 1
    %v81 = vmax.f32 %v79, %v80
    %v82 = vsel %vm67, %v37, -inf
    %v83 = vrot.slane %v82, 4
    %v84 = vmax.f32 %v82, %v83
    %v85 = vrot.slane %v84, 2
    %v86 = vmax.f32 %v84, %v85
    %v87 = vrot.slane %v86, 1
    %v88 = vmax.f32 %v86, %v87
    %v89 = vsel %vm67, %v64, -inf
    %v90 = vrot.slane %v89, 4
    %v91 = vmax.f32 %v89, %v90
    %v92 = vrot.slane %v91, 2
    %v93 = vmax.f32 %v91, %v92
    %v94 = vrot.slane %v93, 1
    %v95 = vmax.f32 %v93, %v94
    %v100 = vcombine.low %v74, %v81
    %v101 = vcombine.low %v88, %v95
    %v104 = vsub.f32 %v36, %v100
    %v105 = vsub.f32 %v37, %v101
    %v106 = vmul.f32 %v104, 1.442695
    %v107 = vpow.pop %v106
    %v108 = vmul.f32 %v105, 1.442695
    %v109 = vpow.pop %v108
    %v112 = vcombine.high %v107, %v107
    %v113 = vcombine.high %v109, %v109
    %v116 = vsel %vm67, %v107, 0.0
    %v117 = vrot.slane %v116, 4
    %v118 = vadd.f32 %v116, %v117
    %v119 = vrot.slane %v118, 2
    %v120 = vadd.f32 %v118, %v119
    %v121 = vrot.slane %v120, 1
    %v122 = vadd.f32 %v120, %v121
    %v123 = vsel %vm67, %v112, 0.0
    %v124 = vrot.slane %v123, 4
    %v125 = vadd.f32 %v123, %v124
    %v126 = vrot.slane %v125, 2
    %v127 = vadd.f32 %v125, %v126
    %v128 = vrot.slane %v127, 1
    %v129 = vadd.f32 %v127, %v128
    %v130 = vsel %vm67, %v109, 0.0
    %v131 = vrot.slane %v130, 4
    %v132 = vadd.f32 %v130, %v131
    %v133 = vrot.slane %v132, 2
    %v134 = vadd.f32 %v132, %v133
    %v135 = vrot.slane %v134, 1
    %v136 = vadd.f32 %v134, %v135
    %v137 = vsel %vm67, %v113, 0.0
    %v138 = vrot.slane %v137, 4
    %v139 = vadd.f32 %v137, %v138
    %v140 = vrot.slane %v139, 2
    %v141 = vadd.f32 %v139, %v140
    %v142 = vrot.slane %v141, 1
    %v143 = vadd.f32 %v141, %v142
    %v144 = vrcp.pop %v122
    %v145 = vrcp.pop %v129
    %v146 = vrcp.pop %v136
    %v147 = vrcp.pop %v143
    %v152 = vcombine.low %v144, %v145
    %v153 = vcombine.low %v146, %v147
    %v156 = vmul.f32 %v107, %v152
    %v157 = vmul.f32 %v109, %v153
    %v158 = vsel %vm57, %v36, 0.0
    %v159 = vsel %vm58, %v63, 0.0
    %v160 = vsel %vm59, %v37, 0.0
    %v161 = vsel %vm60, %v64, 0.0
    %v162 = vsel %vm67, %v158, 0.0
    %v163 = vrot.slane %v162, 4
    %v164 = vadd.f32 %v162, %v163
    %v165 = vrot.slane %v164, 2
    %v166 = vadd.f32 %v164, %v165
    %v167 = vrot.slane %v166, 1
    %v168 = vadd.f32 %v166, %v167
    %v169 = vsel %vm67, %v159, 0.0
    %v170 = vrot.slane %v169, 4
    %v171 = vadd.f32 %v169, %v170
    %v172 = vrot.slane %v171, 2
    %v173 = vadd.f32 %v171, %v172
    %v174 = vrot.slane %v173, 1
    %v175 = vadd.f32 %v173, %v174
    %v176 = vsel %vm67, %v160, 0.0
    %v177 = vrot.slane %v176, 4
    %v178 = vadd.f32 %v176, %v177
    %v179 = vrot.slane %v178, 2
    %v180 = vadd.f32 %v178, %v179
    %v181 = vrot.slane %v180, 1
    %v182 = vadd.f32 %v180, %v181
    %v183 = vsel %vm67, %v161, 0.0
    %v184 = vrot.slane %v183, 4
    %v185 = vadd.f32 %v183, %v184
    %v186 = vrot.slane %v185, 2
    %v187 = vadd.f32 %v185, %v186
    %v188 = vrot.slane %v187, 1
    %v189 = vadd.f32 %v187, %v188
    %v190 = vlog2.pop %v122
    %v191 = vmul.f32 %v190, 0.6931472
    %v192 = vlog2.pop %v129
    %v193 = vmul.f32 %v192, 0.6931472
    %v194 = vlog2.pop %v136
    %v195 = vmul.f32 %v194, 0.6931472
    %v196 = vlog2.pop %v143
    %v197 = vmul.f32 %v196, 0.6931472
    %v198 = vadd.f32 %v74, %v191
    %v199 = vadd.f32 %v81, %v193
    %v200 = vadd.f32 %v88, %v195
    %v201 = vadd.f32 %v95, %v197
    %v202 = vsub.f32 %v198, %v168
    %v203 = vsub.f32 %v199, %v175
    %v204 = vsub.f32 %v200, %v182
    %v205 = vsub.f32 %v201, %v189
    %vm206 = vcmask 1040384
    %v207 = vsel %vm206, %v202, 0.0
    %v208 = vsel %vm206, %v203, 0.0
    %v209 = vadd.f32 %v207, %v208
    %v210 = vsel %vm206, %v204, 0.0
    %v211 = vadd.f32 %v209, %v210
    %v212 = vsel %vm206, %v205, 0.0
    %v213 = vadd.f32 %v211, %v212
    %214 = vadd.xlane.f32.xlu0 %v213
    %v215 = vpop.xlane.xlu0 %214
    %v216 = vrot.slane %v215, 4
    %v217 = vadd.f32 %v215, %v216
    %v218 = vrot.slane %v217, 2
    %v219 = vadd.f32 %v217, %v218
    %v220 = vrot.slane %v219, 1
    %v221 = vadd.f32 %v219, %v220
    %s222 = vtos %v221
    %s223 = smul.f32 %s222, 0.001953125
    %v226 = vcombine.high %v156, %v156
    %v227 = vcombine.high %v157, %v157
    %v230 = vsel %vm57, %v156, 0.0
    %v231 = vsel %vm58, %v226, 0.0
    %v232 = vsel %vm59, %v157, 0.0
    %v233 = vsel %vm60, %v227, 0.0
    %v234 = vsel %vm57, 1, 0
    %v235 = vsel %vm58, 1, 0
    %v236 = vsel %vm59, 1, 0
    %v237 = vsel %vm60, 1, 0
    %v238 = vcvt.s32.f32 %v234
    %v239 = vcvt.s32.f32 %v235
    %v240 = vcvt.s32.f32 %v236
    %v241 = vcvt.s32.f32 %v237
    %v242 = vsel %vm67, %v230, 0.0
    %v243 = vsel %vm67, %v231, 0.0
    %v244 = vadd.f32 %v242, %v243
    %245 = vadd.xlane.f32.xlu0 %v244
    %v246 = vpop.xlane.xlu0 %245
    %v247 = vsel %vm67, %v156, 0.0
    %v248 = vsel %vm67, %v226, 0.0
    %v249 = vadd.f32 %v247, %v248
    %250 = vadd.xlane.f32.xlu0 %v249
    %v251 = vpop.xlane.xlu0 %250
    %v252 = vsel %vm67, %v238, 0.0
    %v253 = vsel %vm67, %v239, 0.0
    %v254 = vadd.f32 %v252, %v253
    %255 = vadd.xlane.f32.xlu0 %v254
    %v256 = vpop.xlane.xlu0 %255
    %v257 = vadd.f32 %v251, %v256
    %v258 = vmul.f32 %v246, 2.0
    %v259 = vadd.f32 %v258, 1.0
    %v260 = vadd.f32 %v257, 1.0
    %v261 = vrcp.pop %v260
    %v262 = vmul.f32 %v259, %v261
    %vm263 = vcmask 3072
    %v264 = vsel %vm263, %v262, 0.0
    %265 = vadd.xlane.f32.xlu0 %v264
    %v266 = vpop.xlane.xlu0 %265
    %v267 = vrot.slane %v266, 4
    %v268 = vadd.f32 %v266, %v267
    %v269 = vrot.slane %v268, 2
    %v270 = vadd.f32 %v268, %v269
    %v271 = vrot.slane %v270, 1
    %v272 = vadd.f32 %v270, %v271
    %s273 = vtos %v272
    %s274 = sadd.f32 %s273, 0.0
    %v275 = vsel %vm67, %v232, 0.0
    %v276 = vsel %vm67, %v233, 0.0
    %v277 = vadd.f32 %v275, %v276
    %278 = vadd.xlane.f32.xlu0 %v277
    %v279 = vpop.xlane.xlu0 %278
    %v280 = vsel %vm67, %v157, 0.0
    %v281 = vsel %vm67, %v227, 0.0
    %v282 = vadd.f32 %v280, %v281
    %283 = vadd.xlane.f32.xlu0 %v282
    %v284 = vpop.xlane.xlu0 %283
    %v285 = vsel %vm67, %v240, 0.0
    %v286 = vsel %vm67, %v241, 0.0
    %v287 = vadd.f32 %v285, %v286
    %288 = vadd.xlane.f32.xlu0 %v287
    %v289 = vpop.xlane.xlu0 %288
    %v290 = vadd.f32 %v284, %v289
    %v291 = vmul.f32 %v279, 2.0
    %v292 = vadd.f32 %v291, 1.0
    %v293 = vadd.f32 %v290, 1.0
    %v294 = vrcp.pop %v293
    %v295 = vmul.f32 %v292, %v294
    %v296 = vsel %vm263, %v295, 0.0
    %297 = vadd.xlane.f32.xlu0 %v296
    %v298 = vpop.xlane.xlu0 %297
    %v299 = vrot.slane %v298, 4
    %v300 = vadd.f32 %v298, %v299
    %v301 = vrot.slane %v300, 2
    %v302 = vadd.f32 %v300, %v301
    %v303 = vrot.slane %v302, 1
    %v304 = vadd.f32 %v302, %v303
    %s305 = vtos %v304
    %s306 = sadd.f32 %s274, %s305
    %s307 = smul.f32 %s306, 0.125
    %s308 = ssub.f32 1.0, %s307
    %s309 = sadd.f32 %s223, %s308
    %s310 = scalar_lea.smem [#allocation7], 0
    %311 = sst [smem:[%s310]] %s309
    // Predicated region
    $region18: #{tpu_custom_call.1} parent=1 // pred_check
      _
    $region19: #{tpu_custom_call.1} parent=1 // pred_check_branch
      %313 = sbr.rel (0) target = $region21
    $region20: #{tpu_custom_call.1} parent=1 // pred_region
      %s315 = ssub.s32 16, 16
      %316 = vsyncadd [#allocation4], %s315
      %319 = dma.smem_to_hbm [#allocation7], 16, %s2, [#allocation4]
    $region21: #{tpu_custom_call.1} parent=1 // pred_fallthru
      _
    // Predicated region
    $region22: #{tpu_custom_call.1} parent=1 // pred_check
      _
    $region23: #{tpu_custom_call.1} parent=1 // pred_check_branch
      %321 = sbr.rel (0) target = $region25
    $region24: #{tpu_custom_call.1} parent=1 // pred_region
      %322 = dma.done [#allocation4], 16
    $region25: #{tpu_custom_call.1} parent=1 // pred_fallthru
      _
    %323 = sfence
    %324 = vsyncpa [#allocation3], 1
    %325 = vsyncpa [#allocation6], 1
    %326 = vsyncpa [#allocation4], 1

</llo_original>
